<compile_context>
chip_gen: v5e
topology: v5e:2x2
jax: 0.10.0
libtpu: 0.0.40
codegen_flags: <defaults>
</compile_context>

<pallas_src>
import functools

import jax
import jax.numpy as jnp
from jax.experimental import pallas as pl
from jax.experimental.pallas import tpu as pltpu


def _round_up(x, m):
    return ((x + m - 1) // m) * m


def _critic_kernel(state_ref, action_ref, w1s_ref, w1a_ref, w2_ref, vecs_ref,
                   out_ref, *, fc1, fc2):
    # Packed small vectors (static ref slices are free):
    #   row 0 = b1, row 1 = b2, row 2 = wq (row vector), row 3 col 0 = bq.
    # These stay f32 (VPU elementwise math in f32, incl. v5e).
    b1 = vecs_ref[0:1, :fc1]          # [1, fc1]
    b2 = vecs_ref[1:2, :fc2]          # [1, fc2]
    wq = vecs_ref[2:3, :fc2]          # [1, fc2]
    bq = vecs_ref[3:4, 0:1]           # [1, 1]

    wdt = w1s_ref.dtype               # bf16 by default (MXU-native), or f32

    # fc1 + ReLU, with the concat fused into two matmuls against the
    # pre-split W1 (MXU, f32 accumulate).  Explicit downcast of the
    # activations so the MXU sees wdt x wdt.
    h1 = jnp.dot(state_ref[...].astype(wdt), w1s_ref[...],
                 preferred_element_type=jnp.float32)
    h1 = h1 + jnp.dot(action_ref[...].astype(wdt), w1a_ref[...],
                      preferred_element_type=jnp.float32)
    h1 = jnp.maximum(h1 + b1, 0.0)

    # fc2 + ReLU.
    h2 = jnp.dot(h1.astype(w2_ref.dtype), w2_ref[...],
                 preferred_element_type=jnp.float32)
    h2 = jnp.maximum(h2 + b2, 0.0)

    # fc_q (out_features = 1): VPU multiply + XLU lane-reduce, scalar bias.
    q = jnp.sum(h2 * wq, axis=-1, keepdims=True) + bq          # [TB, 1] f32

    # Compact store: [TB, 1] — no broadcast, no write amplification.
    out_ref[...] = q.astype(out_ref.dtype)


def critic_forward(state, action, params, *, batch_tile=2048):
    """state: [B, input_dims], action: [B, n_actions] -> q: [B, 1] (float32).

    batch_tile is the knob to sweep; per-grid-step overhead is ~0.35 us.
    """
    w1s, w1a, w2, vecs = params["w1s"], params["w1a"], params["w2"], params["vecs"]
    B = state.shape[0]
    input_dims = w1s.shape[0]
    n_actions = w1a.shape[0]
    fc1 = w1s.shape[1]
    fc2 = w2.shape[1]
    fmax = vecs.shape[1]

    # Batch tile: multiple of 8 (sublane), capped at ceil(B/2) so the
    # "parallel" batch axis has at least 2 grid steps whenever B > 8 —
    # v7x has 2 TensorCores per chip and shards the parallel axis across
    # them; with grid=(1,) one core would idle.  On v5e/v6e (1 TC) the extra
    # grid step costs only ~0.35 us.
    half = _round_up(max(1, -(-B // 2)), 8)
    TB = max(8, min(batch_tile, half))
    B_pad = _round_up(B, TB)
    if B_pad != B:
        state = jnp.pad(state, ((0, B_pad - B), (0, 0)))
        action = jnp.pad(action, ((0, B_pad - B), (0, 0)))

    grid = (B_pad // TB,)
    kernel = functools.partial(_critic_kernel, fc1=fc1, fc2=fc2)

    out = pl.pallas_call(
        kernel,
        out_shape=jax.ShapeDtypeStruct((B_pad, 1), jnp.float32),
        grid_spec=pltpu.PrefetchScalarGridSpec(
            num_scalar_prefetch=0,
            grid=grid,
            in_specs=[
                # Activations tile over batch.
                pl.BlockSpec((TB, input_dims), lambda i: (i, 0)),
                pl.BlockSpec((TB, n_actions), lambda i: (i, 0)),
                # Weights + packed vectors: constant block index -> stay
                # resident in VMEM across grid steps (fetched once).
                pl.BlockSpec((input_dims, fc1), lambda i: (0, 0)),
                pl.BlockSpec((n_actions, fc1), lambda i: (0, 0)),
                pl.BlockSpec((fc1, fc2), lambda i: (0, 0)),
                pl.BlockSpec((4, fmax), lambda i: (0, 0)),
            ],
            out_specs=pl.BlockSpec((TB, 1), lambda i: (i, 0)),
        ),
        compiler_params=pltpu.CompilerParams(
            dimension_semantics=("parallel",)),
    )(state, action, w1s, w1a, w2, vecs)

    return out[:B]


def init_critic_params(key, input_dims, n_actions, fc1_dims, fc2_dims,
                       weight_dtype=jnp.bfloat16):
    """PyTorch-default nn.Linear init: U(-1/sqrt(fan_in), 1/sqrt(fan_in)).

    W1 is stored pre-split into its state / action row blocks; b1, b2, wq, bq
    are packed into a single [4, max(fc1, fc2)] f32 buffer.  Weights default
    to bfloat16 (MXU-native on v5e/v6e/v7x); pass weight_dtype=jnp.float32
    for full precision.
    """
    def uni(k, shape, bound):
        return jax.random.uniform(k, shape, jnp.float32, -bound, bound)

    k1w, k1b, k2w, k2b, k3w, k3b = jax.random.split(key, 6)
    fan1 = input_dims + n_actions
    bd1 = 1.0 / float(fan1) ** 0.5
    bd2 = 1.0 / float(fc1_dims) ** 0.5
    bd3 = 1.0 / float(fc2_dims) ** 0.5

    w1 = uni(k1w, (fan1, fc1_dims), bd1)          # [in+na, fc1]
    b1 = uni(k1b, (fc1_dims,), bd1)
    w2 = uni(k2w, (fc1_dims, fc2_dims), bd2)      # [fc1, fc2]
    b2 = uni(k2b, (fc2_dims,), bd2)
    wq = uni(k3w, (fc2_dims,), bd3)               # fc_q weight as a row vector
    bq = uni(k3b, (), bd3)

    fmax = max(fc1_dims, fc2_dims)
    vecs = jnp.zeros((4, fmax), jnp.float32)
    vecs = vecs.at[0, :fc1_dims].set(b1)
    vecs = vecs.at[1, :fc2_dims].set(b2)
    vecs = vecs.at[2, :fc2_dims].set(wq)
    vecs = vecs.at[3, 0].set(bq)

    return {
        "w1s": w1[:input_dims].astype(weight_dtype),
        "w1a": w1[input_dims:].astype(weight_dtype),
        "w2": w2.astype(weight_dtype),
        "vecs": vecs,  # biases / wq kept f32
    }


def critic_reference(state, action, params):
    """Pure-JAX f32 reference (same math as the PyTorch module's forward)."""
    w1s = params["w1s"].astype(jnp.float32)
    w1a = params["w1a"].astype(jnp.float32)
    w2 = params["w2"].astype(jnp.float32)
    vecs = params["vecs"].astype(jnp.float32)
    fc1, fc2 = w1s.shape[1], w2.shape[1]
    b1, b2 = vecs[0, :fc1], vecs[1, :fc2]
    wq, bq = vecs[2, :fc2], vecs[3, 0]
    h1 = jnp.maximum(state @ w1s + action @ w1a + b1, 0.0)
    h2 = jnp.maximum(h1 @ w2 + b2, 0.0)
    return h2 @ wq[:, None] + bq


if __name__ == "__main__":
    # Small shapes consistent with the module's forward.  128-wide hiddens
    # keep vregs lane-dense (module default is 256; prefer 256 if scaling
    # for v6e/v7x's 256x256 MXU).
    input_dims = 8
    n_actions = 4
    fc1_dims = 128
    fc2_dims = 128

    key = jax.random.PRNGKey(0)
    kp, ks1, ka1, ks2, ka2 = jax.random.split(key, 5)

    # Case 1: f32 weights, tiny batch (single grid step) — tight tolerance.
    params_f32 = init_critic_params(kp, input_dims, n_actions, fc1_dims,
                                    fc2_dims, weight_dtype=jnp.float32)
    state1 = jax.random.normal(ks1, (4, input_dims), jnp.float32)
    action1 = jax.random.normal(ka1, (4, n_actions), jnp.float32)
    q1 = jax.block_until_ready(critic_forward(state1, action1, params_f32))
    q1_ref = critic_reference(state1, action1, params_f32)
    assert q1.shape == (4, 1), q1.shape
    assert jnp.allclose(q1, q1_ref, atol=1e-4, rtol=1e-4), (q1, q1_ref)

    # Case 2: default bf16 weights, batch=40 -> TB=24, two "parallel" grid
    # steps + padded rows — looser tolerance vs. the f32 reference (bf16
    # rounding of weights/activations only; not a kernel bug).
    params_bf16 = init_critic_params(kp, input_dims, n_actions, fc1_dims,
                                     fc2_dims)
    state2 = jax.random.normal(ks2, (40, input_dims), jnp.float32)
    action2 = jax.random.normal(ka2, (40, n_actions), jnp.float32)
    q2 = jax.block_until_ready(critic_forward(state2, action2, params_bf16))
    q2_ref = critic_reference(state2, action2, params_bf16)
    assert q2.shape == (40, 1), q2.shape
    assert jnp.allclose(q2, q2_ref, atol=2e-2, rtol=2e-2), (q2, q2_ref)

    # TODO(synk): Adam optimizer step, checkpoint save/load and device
    # placement are training/infra concerns of the PyTorch module, not part
    # of the forward kernel.

    print("KERNEL_OK")
</pallas_src>

<mosaic_0001>
module attributes {stable_mosaic.version = 11 : i64} {
  func.func @_critic_kernel(%arg0: i32, %arg1: memref<8x8xf32, #tpu.memory_space<vmem>>, %arg2: memref<8x4xf32, #tpu.memory_space<vmem>>, %arg3: memref<8x128xf32, #tpu.memory_space<vmem>>, %arg4: memref<4x128xf32, #tpu.memory_space<vmem>>, %arg5: memref<128x128xf32, #tpu.memory_space<vmem>>, %arg6: memref<4x128xf32, #tpu.memory_space<vmem>>, %arg7: memref<8x1xf32, #tpu.memory_space<vmem>>) attributes {dimension_semantics = [#tpu.dimension_semantics<parallel>], iteration_bounds = array<i64: 1>, scalar_prefetch = 0 : i64, scratch_operands = 0 : i64, tpu.core_type = #tpu.core_type<tc>, window_params = [{transform_indices = @transform_0, window_bounds = array<i64: 8, 8>}, {transform_indices = @transform_1, window_bounds = array<i64: 8, 4>}, {pipeline_mode = #tpu.pipeline_mode<synchronous>, transform_indices = @transform_2, window_bounds = array<i64: 8, 128>}, {pipeline_mode = #tpu.pipeline_mode<synchronous>, transform_indices = @transform_3, window_bounds = array<i64: 4, 128>}, {pipeline_mode = #tpu.pipeline_mode<synchronous>, transform_indices = @transform_4, window_bounds = array<i64: 128, 128>}, {pipeline_mode = #tpu.pipeline_mode<synchronous>, transform_indices = @transform_5, window_bounds = array<i64: 4, 128>}, {transform_indices = @transform_6, window_bounds = array<i64: 8, 1>}]} {
    %c0 = arith.constant 0 : index
    %c0_0 = arith.constant 0 : index
    %0 = vector.load %arg6[%c0, %c0_0] : memref<4x128xf32, #tpu.memory_space<vmem>>, vector<1x128xf32>
    %c1 = arith.constant 1 : index
    %c0_1 = arith.constant 0 : index
    %1 = vector.load %arg6[%c1, %c0_1] : memref<4x128xf32, #tpu.memory_space<vmem>>, vector<1x128xf32>
    %c2 = arith.constant 2 : index
    %c0_2 = arith.constant 0 : index
    %2 = vector.load %arg6[%c2, %c0_2] : memref<4x128xf32, #tpu.memory_space<vmem>>, vector<1x128xf32>
    %c3 = arith.constant 3 : index
    %c0_3 = arith.constant 0 : index
    %3 = vector.load %arg6[%c3, %c0_3] : memref<4x128xf32, #tpu.memory_space<vmem>>, vector<1x1xf32>
    %c0_4 = arith.constant 0 : index
    %c0_5 = arith.constant 0 : index
    %4 = vector.load %arg1[%c0_4, %c0_5] : memref<8x8xf32, #tpu.memory_space<vmem>>, vector<8x8xf32>
    %c0_6 = arith.constant 0 : index
    %c0_7 = arith.constant 0 : index
    %5 = vector.load %arg3[%c0_6, %c0_7] : memref<8x128xf32, #tpu.memory_space<vmem>>, vector<8x128xf32>
    %cst = arith.constant dense<0.000000e+00> : vector<8x128xf32>
    %6 = tpu.matmul %4, %5, %cst {dimension_numbers = #tpu.dot_dimension_numbers<[1], [0], [0], [1], [0, 0, 1, 1], [], []>} : vector<8x8xf32>, vector<8x128xf32>, vector<8x128xf32> -> vector<8x128xf32>
    %c0_8 = arith.constant 0 : index
    %c0_9 = arith.constant 0 : index
    %7 = vector.load %arg2[%c0_8, %c0_9] : memref<8x4xf32, #tpu.memory_space<vmem>>, vector<8x4xf32>
    %c0_10 = arith.constant 0 : index
    %c0_11 = arith.constant 0 : index
    %8 = vector.load %arg4[%c0_10, %c0_11] : memref<4x128xf32, #tpu.memory_space<vmem>>, vector<4x128xf32>
    %cst_12 = arith.constant dense<0.000000e+00> : vector<8x128xf32>
    %9 = tpu.matmul %7, %8, %cst_12 {dimension_numbers = #tpu.dot_dimension_numbers<[1], [0], [0], [1], [0, 0, 1, 1], [], []>} : vector<8x4xf32>, vector<4x128xf32>, vector<8x128xf32> -> vector<8x128xf32>
    %10 = arith.addf %6, %9 : vector<8x128xf32>
    %11 = vector.broadcast %0 : vector<1x128xf32> to vector<8x128xf32>
    %12 = arith.addf %10, %11 : vector<8x128xf32>
    %cst_13 = arith.constant 0.000000e+00 : f32
    %13 = vector.broadcast %cst_13 : f32 to vector<8x128xf32>
    %14 = arith.maximumf %12, %13 : vector<8x128xf32>
    %c0_14 = arith.constant 0 : index
    %c0_15 = arith.constant 0 : index
    %15 = vector.load %arg5[%c0_14, %c0_15] : memref<128x128xf32, #tpu.memory_space<vmem>>, vector<128x128xf32>
    %cst_16 = arith.constant dense<0.000000e+00> : vector<8x128xf32>
    %16 = tpu.matmul %14, %15, %cst_16 {dimension_numbers = #tpu.dot_dimension_numbers<[1], [0], [0], [1], [0, 0, 1, 1], [], []>} : vector<8x128xf32>, vector<128x128xf32>, vector<8x128xf32> -> vector<8x128xf32>
    %17 = vector.broadcast %1 : vector<1x128xf32> to vector<8x128xf32>
    %18 = arith.addf %16, %17 : vector<8x128xf32>
    %cst_17 = arith.constant 0.000000e+00 : f32
    %19 = vector.broadcast %cst_17 : f32 to vector<8x128xf32>
    %20 = arith.maximumf %18, %19 : vector<8x128xf32>
    %21 = vector.broadcast %2 : vector<1x128xf32> to vector<8x128xf32>
    %22 = arith.mulf %20, %21 : vector<8x128xf32>
    %cst_18 = arith.constant dense<0.000000e+00> : vector<8xf32>
    %23 = vector.multi_reduction <add>, %22, %cst_18 [1] : vector<8x128xf32> to vector<8xf32>
    %24 = vector.shape_cast %23 : vector<8xf32> to vector<8x1xf32>
    %25 = vector.broadcast %3 : vector<1x1xf32> to vector<8x1xf32>
    %26 = arith.addf %24, %25 : vector<8x1xf32>
    %c0_19 = arith.constant 0 : index
    %c0_20 = arith.constant 0 : index
    %27 = vector.load %arg7[%c0_19, %c0_20] : memref<8x1xf32, #tpu.memory_space<vmem>>, vector<8x1xf32>
    tpu.vector_store %arg7[%c0_19, %c0_20], %26 {strides = array<i32>} : memref<8x1xf32, #tpu.memory_space<vmem>>, vector<8x1xf32>,
    return
  }
  func.func @transform_0(%arg0: i32) -> (i32, i32) {
    %c0_i32 = arith.constant 0 : i32
    %c0_i32_0 = arith.constant 0 : i32
    return %arg0, %c0_i32 : i32, i32
  }
  func.func @transform_1(%arg0: i32) -> (i32, i32) {
    %c0_i32 = arith.constant 0 : i32
    %c0_i32_0 = arith.constant 0 : i32
    return %arg0, %c0_i32 : i32, i32
  }
  func.func @transform_2(%arg0: i32) -> (i32, i32) {
    %c0_i32 = arith.constant 0 : i32
    %c0_i32_0 = arith.constant 0 : i32
    %c0_i32_1 = arith.constant 0 : i32
    return %c0_i32, %c0_i32_0 : i32, i32
  }
  func.func @transform_3(%arg0: i32) -> (i32, i32) {
    %c0_i32 = arith.constant 0 : i32
    %c0_i32_0 = arith.constant 0 : i32
    %c0_i32_1 = arith.constant 0 : i32
    return %c0_i32, %c0_i32_0 : i32, i32
  }
  func.func @transform_4(%arg0: i32) -> (i32, i32) {
    %c0_i32 = arith.constant 0 : i32
    %c0_i32_0 = arith.constant 0 : i32
    %c0_i32_1 = arith.constant 0 : i32
    return %c0_i32, %c0_i32_0 : i32, i32
  }
  func.func @transform_5(%arg0: i32) -> (i32, i32) {
    %c0_i32 = arith.constant 0 : i32
    %c0_i32_0 = arith.constant 0 : i32
    %c0_i32_1 = arith.constant 0 : i32
    return %c0_i32, %c0_i32_0 : i32, i32
  }
  func.func @transform_6(%arg0: i32) -> (i32, i32) {
    %c0_i32 = arith.constant 0 : i32
    %c0_i32_0 = arith.constant 0 : i32
    return %arg0, %c0_i32 : i32, i32
  }
}

</mosaic_0001>

<llo_original>
// kernel: tpu_custom_call.1
$region0: #{tpu_custom_call.1}
  #allocation0 [shape = 'u32[]', space=smem, size = 0x4, offset = 0x4, fixed_abs, tag = 'smem constant byte address 0x4 - core index']
  #allocation1 [shape = 'u32[72,128]{1,0:T(1,128)}', space=vmem, size = 0x9000, scoped, tag = 'internal scratch']
  %s0 = inlined_call_operand.vmem [shape: f32[8,8], index: 0, kind: input, shape index: {}]
  %s1 = inlined_call_operand.vmem [shape: f32[8,4], index: 1, kind: input, shape index: {}]
  %s2 = inlined_call_operand.hbm [shape: f32[8,128], index: 2, kind: input, shape index: {}]
  %s3 = inlined_call_operand.vmem [shape: f32[4,128], index: 3, kind: input, shape index: {}]
  %s4 = inlined_call_operand.hbm [shape: f32[128,128], index: 4, kind: input, shape index: {}]
  %s5 = inlined_call_operand.vmem [shape: f32[4,128], index: 5, kind: input, shape index: {}]
  %s6 = inlined_call_operand.vmem [shape: f32[8,1], index: 6, kind: output, shape index: {}]
  %s7 = sld [smem:[#allocation0]]
  $region42: #{tpu_custom_call.1} parent=0
    _
  %s9 = ssub.s32 1, %s7
  %s10 = scalar_select 0, %s9, %s7
  $region1: #{tpu_custom_call.1} parent=0
    #allocation2 [shape = 'u8[4096]{0}', space=vmem, size = 0x1000, scoped, tag = 'input window, operand 2, single buffered']
    #allocation3 [shape = 's32[1]{0}', space=sflag, size = 0x4, scoped, tag = 'scoped memory for tpu_custom_call.1']
    #allocation4 [shape = 'u8[65536]{0}', space=vmem, size = 0x10000, scoped, tag = 'input window, operand 4, single buffered']
    #allocation5 [shape = 's32[1]{0}', space=sflag, size = 0x4, scoped, tag = 'scoped memory for tpu_custom_call.1']
    %11 = vsyncpa [#allocation3], 0
    %12 = vsyncpa [#allocation5], 0
    // Predicated region
    $region2: #{tpu_custom_call.1} parent=1 // pred_check
      _
    $region3: #{tpu_custom_call.1} parent=1 // pred_check_branch
      %14 = sbr.rel (0) target = $region5
    $region4: #{tpu_custom_call.1} parent=1 // pred_region
      _
    $region5: #{tpu_custom_call.1} parent=1 // pred_fallthru
      _
    // Predicated region
    $region6: #{tpu_custom_call.1} parent=1 // pred_check
      _
    $region7: #{tpu_custom_call.1} parent=1 // pred_check_branch
      %16 = sbr.rel (0) target = $region9
    $region8: #{tpu_custom_call.1} parent=1 // pred_region
      _
    $region9: #{tpu_custom_call.1} parent=1 // pred_fallthru
      _
    // Predicated region
    $region10: #{tpu_custom_call.1} parent=1 // pred_check
      _
    $region11: #{tpu_custom_call.1} parent=1 // pred_check_branch
      %18 = sbr.rel (0) target = $region13
    $region12: #{tpu_custom_call.1} parent=1 // pred_region
      %20 = vsyncadd [#allocation3], 0
      %s22 = sshll.u32 %s2, 4
      %s23 = int_to_ptr.hbm [resolvable:$true] %s22
      %s24 = sshll.u32 [#allocation2], 4
      %s25 = int_to_ptr.vmem [resolvable:$true] %s24
      %27 = dma.hbm_to_vmem [thread:$0]  %s23, 128, %s25, [#allocation3]
    $region13: #{tpu_custom_call.1} parent=1 // pred_fallthru
      _
    // Predicated region
    $region14: #{tpu_custom_call.1} parent=1 // pred_check
      _
    $region15: #{tpu_custom_call.1} parent=1 // pred_check_branch
      %29 = sbr.rel (0) target = $region17
    $region16: #{tpu_custom_call.1} parent=1 // pred_region
      _
    $region17: #{tpu_custom_call.1} parent=1 // pred_fallthru
      _
    // Predicated region
    $region18: #{tpu_custom_call.1} parent=1 // pred_check
      _
    $region19: #{tpu_custom_call.1} parent=1 // pred_check_branch
      %31 = sbr.rel (0) target = $region21
    $region20: #{tpu_custom_call.1} parent=1 // pred_region
      %33 = vsyncadd [#allocation5], 0
      %s34 = sshll.u32 %s4, 4
      %s35 = int_to_ptr.hbm [resolvable:$true] %s34
      %s36 = sshll.u32 [#allocation4], 4
      %s37 = int_to_ptr.vmem [resolvable:$true] %s36
      %42 = dma.hbm_to_vmem [thread:$0]  %s35, 2048, %s37, [#allocation5], 128, 128, 8
    $region21: #{tpu_custom_call.1} parent=1 // pred_fallthru
      _
    // Predicated region
    $region22: #{tpu_custom_call.1} parent=1 // pred_check
      _
    $region23: #{tpu_custom_call.1} parent=1 // pred_check_branch
      %44 = sbr.rel (0) target = $region25
    $region24: #{tpu_custom_call.1} parent=1 // pred_region
      _
    $region25: #{tpu_custom_call.1} parent=1 // pred_fallthru
      _
    // Predicated region
    $region26: #{tpu_custom_call.1} parent=1 // pred_check
      _
    $region27: #{tpu_custom_call.1} parent=1 // pred_check_branch
      %46 = sbr.rel (0) target = $region29
    $region28: #{tpu_custom_call.1} parent=1 // pred_region
      %48 = dma.done [#allocation3], 128
    $region29: #{tpu_custom_call.1} parent=1 // pred_fallthru
      _
    // Predicated region
    $region30: #{tpu_custom_call.1} parent=1 // pred_check
      _
    $region31: #{tpu_custom_call.1} parent=1 // pred_check_branch
      %50 = sbr.rel (0) target = $region33
    $region32: #{tpu_custom_call.1} parent=1 // pred_region
      %52 = dma.done [#allocation5], 2048
    $region33: #{tpu_custom_call.1} parent=1 // pred_fallthru
      _
    %v53 = vld [vmem:[%s5] sm:$0x1]
    %v54 = vld [vmem:[%s5 + $0x1] sm:$0x1]
    %v55 = vld [vmem:[%s5 + $0x2] sm:$0x1]
    %v56 = vld [vmem:[%s5 + $0x3] sm:$0x1]
    %v57 = vld [vmem:[%s0] sm:$0xff]
    %v58 = vld [vmem:[#allocation2] sm:$0xff]
    %v59 = vld [vmem:[%s1] sm:$0xff]
    %v60 = vld [vmem:[%s3] sm:$0xf]
    %vm61 = vcmask 31744
    %v63 = vsel %vm61, %v59, 0
    %vm65 = vcmask 1043456
    %v67 = vsel %vm65, %v60, 0
    %69 = vmatpush.msra.mxu0 0.0
    %70 = vmatpush.msra.mxu0 0.0
    %71 = vmatpush.msra.mxu0 0.0
    %72 = vmatpush.msra.mxu0 0.0
    %73 = vmatpush.msra.mxu0 0.0
    %74 = vmatpush.msra.mxu0 0.0
    %75 = vmatpush.msra.mxu0 0.0
    %76 = vmatpush.msra.mxu0 0.0
    %77 = vmatpush.msra.mxu0 0.0
    %78 = vmatpush.msra.mxu0 0.0
    %79 = vmatpush.msra.mxu0 0.0
    %80 = vmatpush.msra.mxu0 0.0
    %81 = vmatpush.msra.mxu0 0.0
    %82 = vmatpush.msra.mxu0 0.0
    %83 = vmatpush.msra.mxu0 0.0
    %84 = vmatpush.msra.mxu0 %v67
    %85 = vmatmul.f32.gmra.mxu0 %v63
    %v86 = vpop.f32.mrf.mxu0
    %v87 = vadd.f32 0.0, %v86
    %88 = vdwg.mxu0
    %vm89 = vcmask 64512
    %v91 = vsel %vm89, %v57, 0
    %93 = vmatpush.msra.mxu0 0.0
    %94 = vmatpush.msra.mxu0 0.0
    %95 = vmatpush.msra.mxu0 0.0
    %96 = vmatpush.msra.mxu0 0.0
    %97 = vmatpush.msra.mxu0 0.0
    %98 = vmatpush.msra.mxu0 0.0
    %99 = vmatpush.msra.mxu0 0.0
    %100 = vmatpush.msra.mxu0 0.0
    %101 = vmatpush.msra.mxu0 0.0
    %102 = vmatpush.msra.mxu0 0.0
    %103 = vmatpush.msra.mxu0 0.0
    %104 = vmatpush.msra.mxu0 0.0
    %105 = vmatpush.msra.mxu0 0.0
    %106 = vmatpush.msra.mxu0 0.0
    %107 = vmatpush.msra.mxu0 0.0
    %108 = vmatpush.msra.mxu0 %v58
    %109 = vmatmul.f32.gmra.mxu0 %v91
    %v110 = vpop.f32.mrf.mxu0
    %v111 = vadd.f32 %v87, %v110
    %112 = vdwg.mxu0
    %v113 = vperm.slane %v53, 0
    %v114 = vadd.f32 %v111, %v113
    %v115 = vmax.f32 %v114, 0.0
    %v116 = vld [vmem:[#allocation4] sm:$0xff]
    %v117 = vld [vmem:[#allocation4 + $0x8] sm:$0xff]
    %v118 = vld [vmem:[#allocation4 + $0x10] sm:$0xff]
    %v119 = vld [vmem:[#allocation4 + $0x18] sm:$0xff]
    %v120 = vld [vmem:[#allocation4 + $0x20] sm:$0xff]
    %v121 = vld [vmem:[#allocation4 + $0x28] sm:$0xff]
    %v122 = vld [vmem:[#allocation4 + $0x30] sm:$0xff]
    %v123 = vld [vmem:[#allocation4 + $0x38] sm:$0xff]
    %v124 = vld [vmem:[#allocation4 + $0x40] sm:$0xff]
    %v125 = vld [vmem:[#allocation4 + $0x48] sm:$0xff]
    %v126 = vld [vmem:[#allocation4 + $0x50] sm:$0xff]
    %v127 = vld [vmem:[#allocation4 + $0x58] sm:$0xff]
    %v128 = vld [vmem:[#allocation4 + $0x60] sm:$0xff]
    %v129 = vld [vmem:[#allocation4 + $0x68] sm:$0xff]
    %v130 = vld [vmem:[#allocation4 + $0x70] sm:$0xff]
    %v131 = vld [vmem:[#allocation4 + $0x78] sm:$0xff]
    %v132 = vperm.slane %v54, 0
    %133 = vmatpush.msra.mxu0 %v131
    %134 = vmatpush.msra.mxu0 %v130
    %135 = vmatpush.msra.mxu0 %v129
    %136 = vmatpush.msra.mxu0 %v128
    %137 = vmatpush.msra.mxu0 %v127
    %138 = vmatpush.msra.mxu0 %v126
    %139 = vmatpush.msra.mxu0 %v125
    %140 = vmatpush.msra.mxu0 %v124
    %141 = vmatpush.msra.mxu0 %v123
    %142 = vmatpush.msra.mxu0 %v122
    %143 = vmatpush.msra.mxu0 %v121
    %144 = vmatpush.msra.mxu0 %v120
    %145 = vmatpush.msra.mxu0 %v119
    %146 = vmatpush.msra.mxu0 %v118
    %147 = vmatpush.msra.mxu0 %v117
    %148 = vmatpush.msra.mxu0 %v116
    %149 = vmatmul.f32.gmra.mxu0 %v115
    %v150 = vpop.f32.mrf.mxu0
    %v151 = vadd.f32 %v132, %v150
    %152 = vdwg.mxu0
    %v153 = vmax.f32 %v151, 0.0
    %v154 = vperm.slane %v55, 0
    %v155 = vmul.f32 %v153, %v154
    %156 = vadd.xlane.f32.xlu0 %v155
    %v157 = vpop.xlane.xlu0 %156
    %v158 = vperm.slane %v56, 0
    %v159 = vadd.f32 %v157, %v158
    %vm160 = vcmask 7168
    %161 = vst.msk [vmem:[%s6] sm:$0xff] %vm160, %v159
    // Predicated region
    $region34: #{tpu_custom_call.1} parent=1 // pred_check
      _
    $region35: #{tpu_custom_call.1} parent=1 // pred_check_branch
      %163 = sbr.rel (0) target = $region37
    $region36: #{tpu_custom_call.1} parent=1 // pred_region
      _
    $region37: #{tpu_custom_call.1} parent=1 // pred_fallthru
      _
    // Predicated region
    $region38: #{tpu_custom_call.1} parent=1 // pred_check
      _
    $region39: #{tpu_custom_call.1} parent=1 // pred_check_branch
      %165 = sbr.rel (0) target = $region41
    $region40: #{tpu_custom_call.1} parent=1 // pred_region
      _
    $region41: #{tpu_custom_call.1} parent=1 // pred_fallthru
      _
    %166 = vsyncpa [#allocation3], 1
    %167 = vsyncpa [#allocation5], 1

</llo_original>
